<compile_context>
chip_gen: v6e
topology: v6e:2x2x1
jax: 0.10.0
libtpu: 0.0.40
codegen_flags: <defaults>
</compile_context>

<pallas_src>
import jax
import jax.numpy as jnp
import numpy as np
from jax.experimental import pallas as pl
from jax.experimental.pallas import tpu as pltpu


_VMEM_LIMIT = 48 * 1024 * 1024   # explicit scoped-VMEM budget (< v7x 64 MiB physical)
_TM_TARGET = 8192                # lane-tile target for the M axis


def _round_up(x, m):
    return -(-x // m) * m


def _pick_tm(m, target=_TM_TARGET):
    """Lane tile for the M = N*H*W axis.

    Large tiles amortize the ~0.35us/grid-step overhead (the blocks only have
    8-36 sublane rows, so bytes-per-step is the limiter, not VMEM: even at
    tm=8192 the deform kernel needs < 3 MiB double-buffered).  When the
    problem is big enough we keep >= 2 grid steps so v7x's two TensorCores
    can share the 'parallel' M axis."""
    m128 = _round_up(m, 128)
    if m128 <= 512:
        return m128                                   # tiny problem: one step
    return min(target, _round_up(m128 // 2, 128))     # >= 2 steps, capped at target


# ----------------------------------------------------------------------------
# Pallas kernels (lane-dense: spatial M on the 128-lane axis)
# ----------------------------------------------------------------------------

def _matmul_t_bias_kernel(w_ref, b_ref, p_ref, o_ref):
    # o[Co, tm] = W[Co, KC] @ P[KC, tm] + b[Co, 1]
    o_ref[...] = (
        jnp.dot(w_ref[...], p_ref[...], preferred_element_type=jnp.float32)
        + b_ref[...]
    )


def matmul_t_bias(w, b, p, *, tm):
    """Lane-dense matmul: W[Co,KC] @ P[KC,Mpad] + b[Co,1] -> [Co,Mpad] f32."""
    Co, KC = w.shape
    Mpad = p.shape[1]
    assert tm % 128 == 0 and Mpad % tm == 0
    return pl.pallas_call(
        _matmul_t_bias_kernel,
        out_shape=jax.ShapeDtypeStruct((Co, Mpad), jnp.float32),
        grid_spec=pltpu.PrefetchScalarGridSpec(
            num_scalar_prefetch=0,
            grid=(Mpad // tm,),
            in_specs=[
                pl.BlockSpec((Co, KC), lambda i: (0, 0)),
                pl.BlockSpec((Co, 1), lambda i: (0, 0)),
                pl.BlockSpec((KC, tm), lambda i: (0, i)),
            ],
            out_specs=pl.BlockSpec((Co, tm), lambda i: (0, i)),
        ),
        compiler_params=pltpu.CompilerParams(
            dimension_semantics=("parallel",),
            vmem_limit_bytes=_VMEM_LIMIT),
    )(w, b, p)


def _deform_mm_t_kernel(wd_ref, p_ref, y_ref, psum_ref, pssq_ref):
    # y^T[Cout, tm] = Wd[Cout, KC] @ patches^T[KC, tm]
    # (deform-conv bias omitted: a per-channel constant cancels exactly under
    #  training-mode BatchNorm; padded M columns are exact zeros so they
    #  contribute nothing to the partial stats -> no masking needed.)
    y = jnp.dot(wd_ref[...], p_ref[...], preferred_element_type=jnp.float32)
    y_ref[...] = y

    # Per-program partial BatchNorm stats, stored lane-broadcast into a
    # 128-wide block (unmasked, lane-dense vst); reduced in JAX afterwards.
    s = jnp.sum(y, axis=1, keepdims=True)            # [Cout, 1]
    sq = jnp.sum(y * y, axis=1, keepdims=True)       # [Cout, 1]
    psum_ref[...] = jnp.broadcast_to(s, psum_ref.shape)
    pssq_ref[...] = jnp.broadcast_to(sq, pssq_ref.shape)


def deform_matmul_t(wd, p, *, tm):
    """wd: [Cout,KC] bf16, p: [KC,Mpad] bf16.

    Returns (y^T [Cout,Mpad] f32, partial sums [Cout, ngrid*128],
             partial sum-of-squares [Cout, ngrid*128])."""
    Co, KC = wd.shape
    Mpad = p.shape[1]
    assert tm % 128 == 0 and Mpad % tm == 0
    ngrid = Mpad // tm
    return pl.pallas_call(
        _deform_mm_t_kernel,
        out_shape=(
            jax.ShapeDtypeStruct((Co, Mpad), jnp.float32),
            jax.ShapeDtypeStruct((Co, ngrid * 128), jnp.float32),
            jax.ShapeDtypeStruct((Co, ngrid * 128), jnp.float32),
        ),
        grid_spec=pltpu.PrefetchScalarGridSpec(
            num_scalar_prefetch=0,
            grid=(ngrid,),
            in_specs=[
                pl.BlockSpec((Co, KC), lambda i: (0, 0)),
                pl.BlockSpec((KC, tm), lambda i: (0, i)),
            ],
            out_specs=(
                pl.BlockSpec((Co, tm), lambda i: (0, i)),
                pl.BlockSpec((Co, 128), lambda i: (0, i)),
                pl.BlockSpec((Co, 128), lambda i: (0, i)),
            ),
        ),
        compiler_params=pltpu.CompilerParams(
            dimension_semantics=("parallel",),   # per-program disjoint blocks
            vmem_limit_bytes=_VMEM_LIMIT),
    )(wd, p)


# ----------------------------------------------------------------------------
# JAX glue: im2col and deformable bilinear gather (transposed [KC, M] layout)
# ----------------------------------------------------------------------------

def _im2col_T(x_nhwc, K, pad):
    """-> [K*K*C, N*H*W] f32, KC axis ordered (kh, kw, ci)."""
    # TODO(synk): longer-term, fold im2col into the offset-conv Pallas kernel
    # (read a [C, M(+halo)] tile and synthesize the 9 taps with pltpu.roll)
    # to cut the ~9x-inflated patch-stream HBM traffic.
    N, H, W, C = x_nhwc.shape
    xp = jnp.pad(x_nhwc, ((0, 0), (pad, pad), (pad, pad), (0, 0)))
    cols = []
    for kh in range(K):
        for kw in range(K):
            cols.append(xp[:, kh:kh + H, kw:kw + W, :])
    patches = jnp.stack(cols, axis=0)                    # [KK, N, H, W, C]
    patches = jnp.transpose(patches, (0, 4, 1, 2, 3))    # [KK, C, N, H, W]
    return patches.reshape(K * K * C, N * H * W)


def _bilinear_patches_T(x_nhwc, off_y, off_x, K, pad):
    """off_y, off_x: [K*K, N, H, W] (dy, dx per tap, KK-leading layout).

    Gathers the 4 neighbours, combines them bilinearly (out-of-bounds taps
    masked to zero) and returns sampled patches as [K*K*C, N*H*W] in bf16.
    """
    # TODO(synk): the data-dependent gather stays in plain JAX; Pallas TPU has
    # no clean dynamic-gather primitive for this access pattern.
    N, H, W, C = x_nhwc.shape
    KK = K * K
    kh = (jnp.arange(KK) // K).astype(jnp.float32)[:, None, None, None]
    kw = (jnp.arange(KK) % K).astype(jnp.float32)[:, None, None, None]
    hh = jnp.arange(H, dtype=jnp.float32)[None, None, :, None]
    ww = jnp.arange(W, dtype=jnp.float32)[None, None, None, :]

    p_y = hh - pad + kh + off_y            # [KK, N, H, W]
    p_x = ww - pad + kw + off_x

    y0 = jnp.floor(p_y)
    x0 = jnp.floor(p_x)
    ly = p_y - y0
    lx = p_x - x0
    y0i = y0.astype(jnp.int32)
    x0i = x0.astype(jnp.int32)
    y1i = y0i + 1
    x1i = x0i + 1

    def valid(yi, xi):
        return ((yi >= 0) & (yi < H) & (xi >= 0) & (xi < W)).astype(jnp.float32)

    w00 = (1.0 - ly) * (1.0 - lx) * valid(y0i, x0i)
    w01 = (1.0 - ly) * lx * valid(y0i, x1i)
    w10 = ly * (1.0 - lx) * valid(y1i, x0i)
    w11 = ly * lx * valid(y1i, x1i)

    n_idx = jnp.arange(N)[None, :, None, None]

    def gather(yi, xi):
        yc = jnp.clip(yi, 0, H - 1)
        xc = jnp.clip(xi, 0, W - 1)
        return x_nhwc[n_idx, yc, xc]                 # [KK, N, H, W, C]

    samp = (w00[..., None] * gather(y0i, x0i) + w01[..., None] * gather(y0i, x1i)
            + w10[..., None] * gather(y1i, x0i) + w11[..., None] * gather(y1i, x1i))
    # Cast BEFORE the big transpose so the copy moves bf16, not f32.
    samp = samp.astype(jnp.bfloat16)
    sampT = jnp.transpose(samp, (0, 4, 1, 2, 3)).reshape(KK * C, N * H * W)
    return sampT


# ----------------------------------------------------------------------------
# Full forward (DeformableConv.forward equivalent)
# ----------------------------------------------------------------------------

def deformable_conv_forward(x_nchw, params, *, K=3, pad=1, tm=None, eps=1e-5):
    x = jnp.transpose(x_nchw, (0, 2, 3, 1)).astype(jnp.float32)   # NCHW -> NHWC
    N, H, W, C_in = x.shape
    M = N * H * W
    KK = K * K
    KC = KK * C_in
    if tm is None:
        tm = _pick_tm(M)
    Mpad = _round_up(M, tm)

    def pad_m(a):
        return a if Mpad == M else jnp.pad(a, ((0, 0), (0, Mpad - M)))

    # -- offset conv: im2col (transposed, bf16) + lane-dense Pallas matmul --
    xpatchT = pad_m(_im2col_T(x, K, pad).astype(jnp.bfloat16))     # [KC, Mpad]
    w_offT = (jnp.transpose(params["w_off"], (0, 2, 3, 1))
              .reshape(2 * KK, KC).astype(jnp.bfloat16))
    offT = matmul_t_bias(w_offT, params["b_off"].reshape(-1, 1), xpatchT, tm=tm)

    # Offsets consumed directly in [KK, 2, N, H, W] layout (no transpose).
    off = offT[:, :M].reshape(KK, 2, N, H, W)

    # -- deformable sampling (gather + bilinear combine glue), bf16 stream --
    sampT = pad_m(_bilinear_patches_T(x, off[:, 0], off[:, 1], K, pad))

    # -- deformable conv + fused per-program BN-stat partials (Pallas) --
    w_dT = (jnp.transpose(params["w_d"], (0, 2, 3, 1))
            .reshape(-1, KC).astype(jnp.bfloat16))
    C_out = w_dT.shape[0]
    yT, psum, pssq = deform_matmul_t(w_dT, sampT, tm=tm)

    ngrid = Mpad // tm
    csum = psum.reshape(C_out, ngrid, 128)[:, :, 0].sum(axis=1)    # [C_out]
    cssq = pssq.reshape(C_out, ngrid, 128)[:, :, 0].sum(axis=1)    # [C_out]

    # -- BatchNorm (training-mode batch statistics, biased variance) + ReLU --
    # NOTE: the deform-conv bias b_d cancels exactly under mean subtraction,
    # so it never enters.  var = E[y^2] - mean^2 is fine at these magnitudes;
    # use a centered second pass / compensated sums if activations grow.
    mean = csum / M
    var = cssq / M - mean * mean
    scale = params["gamma"] * jax.lax.rsqrt(var + eps)
    shift = params["beta"] - mean * scale

    # BN + ReLU fused (by XLA) into the final reshape/transpose — no separate
    # Pallas pass, saving one full read+write of the [C_out, Mpad] intermediate.
    outT = jnp.maximum(yT[:, :M] * scale[:, None] + shift[:, None], 0.0)
    out = outT.reshape(C_out, N, H, W)
    return jnp.transpose(out, (1, 0, 2, 3))                        # -> NCHW


# ----------------------------------------------------------------------------
# Pure-JAX reference (same semantics incl. the intentional bf16 patch casts)
# ----------------------------------------------------------------------------

def _reference_forward(x_nchw, params, *, K=3, pad=1, eps=1e-5):
    x = jnp.transpose(x_nchw, (0, 2, 3, 1)).astype(jnp.float32)
    N, H, W, C_in = x.shape
    KK = K * K
    KC = KK * C_in
    xpatchT = _im2col_T(x, K, pad).astype(jnp.bfloat16)
    w_offT = (jnp.transpose(params["w_off"], (0, 2, 3, 1))
              .reshape(2 * KK, KC).astype(jnp.bfloat16))
    offT = (jnp.dot(w_offT, xpatchT, preferred_element_type=jnp.float32)
            + params["b_off"].reshape(-1, 1))
    off = offT.reshape(KK, 2, N, H, W)
    sampT = _bilinear_patches_T(x, off[:, 0], off[:, 1], K, pad)
    w_dT = (jnp.transpose(params["w_d"], (0, 2, 3, 1))
            .reshape(-1, KC).astype(jnp.bfloat16))
    y = (jnp.dot(w_dT, sampT, preferred_element_type=jnp.float32)
         + params["b_d"].reshape(-1, 1))                           # true op keeps bias
    mean = y.mean(axis=1, keepdims=True)
    var = ((y - mean) ** 2).mean(axis=1, keepdims=True)
    yn = ((y - mean) * jax.lax.rsqrt(var + eps) * params["gamma"].reshape(-1, 1)
          + params["beta"].reshape(-1, 1))
    out = jnp.maximum(yn, 0.0).reshape(-1, N, H, W)
    return jnp.transpose(out, (1, 0, 2, 3))


# ----------------------------------------------------------------------------

if __name__ == "__main__":
    key = jax.random.PRNGKey(0)
    k1, k2, k3, k4, kx = jax.random.split(key, 5)

    C_in, C_out, K = 4, 8, 3
    params = dict(
        w_off=0.1 * jax.random.normal(k1, (2 * K * K, C_in, K, K), jnp.float32),
        b_off=0.1 * jax.random.normal(k2, (2 * K * K,), jnp.float32),
        w_d=0.1 * jax.random.normal(k3, (C_out, C_in, K, K), jnp.float32),
        b_d=0.1 * jax.random.normal(k4, (C_out,), jnp.float32),
        gamma=jnp.ones((C_out,), jnp.float32),   # BatchNorm2d default affine init
        beta=jnp.zeros((C_out,), jnp.float32),
    )

    x = jax.random.normal(kx, (2, C_in, 16, 16), jnp.float32)   # NCHW like PyTorch

    fwd = jax.jit(deformable_conv_forward)
    out = fwd(x, params)
    out = jax.block_until_ready(out)
    assert out.shape == (2, C_out, 16, 16)

    ref = _reference_forward(x, params)
    np.testing.assert_allclose(np.asarray(out), np.asarray(ref),
                               rtol=2e-3, atol=2e-3)

    print("KERNEL_OK")
</pallas_src>

<mosaic_0001>
module attributes {stable_mosaic.version = 11 : i64} {
  func.func @_matmul_t_bias_kernel(%arg0: i32, %arg1: memref<18x36xbf16, #tpu.memory_space<vmem>>, %arg2: memref<18x1xf32, #tpu.memory_space<vmem>>, %arg3: memref<36x512xbf16, #tpu.memory_space<vmem>>, %arg4: memref<18x512xf32, #tpu.memory_space<vmem>>) attributes {dimension_semantics = [#tpu.dimension_semantics<parallel>], iteration_bounds = array<i64: 1>, scalar_prefetch = 0 : i64, scratch_operands = 0 : i64, tpu.core_type = #tpu.core_type<tc>, window_params = [{pipeline_mode = #tpu.pipeline_mode<synchronous>, transform_indices = @transform_0, window_bounds = array<i64: 18, 36>}, {pipeline_mode = #tpu.pipeline_mode<synchronous>, transform_indices = @transform_1, window_bounds = array<i64: 18, 1>}, {transform_indices = @transform_2, window_bounds = array<i64: 36, 512>}, {transform_indices = @transform_3, window_bounds = array<i64: 18, 512>}]} {
    %c0 = arith.constant 0 : index
    %c0_0 = arith.constant 0 : index
    %0 = vector.load %arg1[%c0, %c0_0] : memref<18x36xbf16, #tpu.memory_space<vmem>>, vector<18x36xbf16>
    %c0_1 = arith.constant 0 : index
    %c0_2 = arith.constant 0 : index
    %1 = vector.load %arg3[%c0_1, %c0_2] : memref<36x512xbf16, #tpu.memory_space<vmem>>, vector<36x512xbf16>
    %cst = arith.constant dense<0.000000e+00> : vector<18x512xf32>
    %2 = tpu.matmul %0, %1, %cst {dimension_numbers = #tpu.dot_dimension_numbers<[1], [0], [0], [1], [0, 0, 1, 1], [], []>} : vector<18x36xbf16>, vector<36x512xbf16>, vector<18x512xf32> -> vector<18x512xf32>
    %c0_3 = arith.constant 0 : index
    %c0_4 = arith.constant 0 : index
    %3 = vector.load %arg2[%c0_3, %c0_4] : memref<18x1xf32, #tpu.memory_space<vmem>>, vector<18x1xf32>
    %4 = vector.broadcast %3 : vector<18x1xf32> to vector<18x512xf32>
    %5 = arith.addf %2, %4 : vector<18x512xf32>
    %c0_5 = arith.constant 0 : index
    %c0_6 = arith.constant 0 : index
    %6 = vector.load %arg4[%c0_5, %c0_6] : memref<18x512xf32, #tpu.memory_space<vmem>>, vector<18x512xf32>
    tpu.vector_store %arg4[%c0_5, %c0_6], %5 {strides = array<i32>} : memref<18x512xf32, #tpu.memory_space<vmem>>, vector<18x512xf32>,
    return
  }
  func.func @transform_0(%arg0: i32) -> (i32, i32) {
    %c0_i32 = arith.constant 0 : i32
    %c0_i32_0 = arith.constant 0 : i32
    %c0_i32_1 = arith.constant 0 : i32
    return %c0_i32, %c0_i32_0 : i32, i32
  }
  func.func @transform_1(%arg0: i32) -> (i32, i32) {
    %c0_i32 = arith.constant 0 : i32
    %c0_i32_0 = arith.constant 0 : i32
    %c0_i32_1 = arith.constant 0 : i32
    return %c0_i32, %c0_i32_0 : i32, i32
  }
  func.func @transform_2(%arg0: i32) -> (i32, i32) {
    %c0_i32 = arith.constant 0 : i32
    %c0_i32_0 = arith.constant 0 : i32
    return %c0_i32, %arg0 : i32, i32
  }
  func.func @transform_3(%arg0: i32) -> (i32, i32) {
    %c0_i32 = arith.constant 0 : i32
    %c0_i32_0 = arith.constant 0 : i32
    return %c0_i32, %arg0 : i32, i32
  }
}

module attributes {stable_mosaic.version = 11 : i64} {
  func.func @_deform_mm_t_kernel(%arg0: i32, %arg1: memref<8x36xbf16, #tpu.memory_space<vmem>>, %arg2: memref<36x512xbf16, #tpu.memory_space<vmem>>, %arg3: memref<8x512xf32, #tpu.memory_space<vmem>>, %arg4: memref<8x128xf32, #tpu.memory_space<vmem>>, %arg5: memref<8x128xf32, #tpu.memory_space<vmem>>) attributes {dimension_semantics = [#tpu.dimension_semantics<parallel>], iteration_bounds = array<i64: 1>, scalar_prefetch = 0 : i64, scratch_operands = 0 : i64, tpu.core_type = #tpu.core_type<tc>, window_params = [{pipeline_mode = #tpu.pipeline_mode<synchronous>, transform_indices = @transform_0, window_bounds = array<i64: 8, 36>}, {transform_indices = @transform_1, window_bounds = array<i64: 36, 512>}, {transform_indices = @transform_2, window_bounds = array<i64: 8, 512>}, {transform_indices = @transform_3, window_bounds = array<i64: 8, 128>}, {transform_indices = @transform_4, window_bounds = array<i64: 8, 128>}]} {
    %c0 = arith.constant 0 : index
    %c0_0 = arith.constant 0 : index
    %0 = vector.load %arg1[%c0, %c0_0] : memref<8x36xbf16, #tpu.memory_space<vmem>>, vector<8x36xbf16>
    %c0_1 = arith.constant 0 : index
    %c0_2 = arith.constant 0 : index
    %1 = vector.load %arg2[%c0_1, %c0_2] : memref<36x512xbf16, #tpu.memory_space<vmem>>, vector<36x512xbf16>
    %cst = arith.constant dense<0.000000e+00> : vector<8x512xf32>
    %2 = tpu.matmul %0, %1, %cst {dimension_numbers = #tpu.dot_dimension_numbers<[1], [0], [0], [1], [0, 0, 1, 1], [], []>} : vector<8x36xbf16>, vector<36x512xbf16>, vector<8x512xf32> -> vector<8x512xf32>
    %c0_3 = arith.constant 0 : index
    %c0_4 = arith.constant 0 : index
    %3 = vector.load %arg3[%c0_3, %c0_4] : memref<8x512xf32, #tpu.memory_space<vmem>>, vector<8x512xf32>
    tpu.vector_store %arg3[%c0_3, %c0_4], %2 {strides = array<i32>} : memref<8x512xf32, #tpu.memory_space<vmem>>, vector<8x512xf32>,
    %cst_5 = arith.constant dense<0.000000e+00> : vector<8xf32>
    %4 = vector.multi_reduction <add>, %2, %cst_5 [1] : vector<8x512xf32> to vector<8xf32>
    %5 = vector.shape_cast %4 : vector<8xf32> to vector<8x1xf32>
    %6 = arith.mulf %2, %2 : vector<8x512xf32>
    %cst_6 = arith.constant dense<0.000000e+00> : vector<8xf32>
    %7 = vector.multi_reduction <add>, %6, %cst_6 [1] : vector<8x512xf32> to vector<8xf32>
    %8 = vector.shape_cast %7 : vector<8xf32> to vector<8x1xf32>
    %9 = vector.shape_cast %5 : vector<8x1xf32> to vector<8x1xf32>
    %10 = vector.broadcast %9 : vector<8x1xf32> to vector<8x128xf32>
    %c0_7 = arith.constant 0 : index
    %c0_8 = arith.constant 0 : index
    %11 = vector.load %arg4[%c0_7, %c0_8] : memref<8x128xf32, #tpu.memory_space<vmem>>, vector<8x128xf32>
    tpu.vector_store %arg4[%c0_7, %c0_8], %10 {strides = array<i32>} : memref<8x128xf32, #tpu.memory_space<vmem>>, vector<8x128xf32>,
    %12 = vector.shape_cast %8 : vector<8x1xf32> to vector<8x1xf32>
    %13 = vector.broadcast %12 : vector<8x1xf32> to vector<8x128xf32>
    %c0_9 = arith.constant 0 : index
    %c0_10 = arith.constant 0 : index
    %14 = vector.load %arg5[%c0_9, %c0_10] : memref<8x128xf32, #tpu.memory_space<vmem>>, vector<8x128xf32>
    tpu.vector_store %arg5[%c0_9, %c0_10], %13 {strides = array<i32>} : memref<8x128xf32, #tpu.memory_space<vmem>>, vector<8x128xf32>,
    return
  }
  func.func @transform_0(%arg0: i32) -> (i32, i32) {
    %c0_i32 = arith.constant 0 : i32
    %c0_i32_0 = arith.constant 0 : i32
    %c0_i32_1 = arith.constant 0 : i32
    return %c0_i32, %c0_i32_0 : i32, i32
  }
  func.func @transform_1(%arg0: i32) -> (i32, i32) {
    %c0_i32 = arith.constant 0 : i32
    %c0_i32_0 = arith.constant 0 : i32
    return %c0_i32, %arg0 : i32, i32
  }
  func.func @transform_2(%arg0: i32) -> (i32, i32) {
    %c0_i32 = arith.constant 0 : i32
    %c0_i32_0 = arith.constant 0 : i32
    return %c0_i32, %arg0 : i32, i32
  }
  func.func @transform_3(%arg0: i32) -> (i32, i32) {
    %c0_i32 = arith.constant 0 : i32
    %c0_i32_0 = arith.constant 0 : i32
    return %c0_i32, %arg0 : i32, i32
  }
  func.func @transform_4(%arg0: i32) -> (i32, i32) {
    %c0_i32 = arith.constant 0 : i32
    %c0_i32_0 = arith.constant 0 : i32
    return %c0_i32, %arg0 : i32, i32
  }
}

</mosaic_0001>

<llo_original>
// kernel: deformable_conv_forward.2
$region0: #{deformable_conv_forward.2}
  #allocation0 [shape = 'u32[]', space=smem, size = 0x4, offset = 0x4, fixed_abs, tag = 'smem constant byte address 0x4 - core index']
  #allocation1 [shape = 'u32[144,128]{1,0:T(1,128)}', space=vmem, size = 0x12000, scoped, tag = 'internal scratch']
  %s0 = inlined_call_operand.vmem [shape: bf16[18,36], index: 0, kind: input, shape index: {}]
  %s1 = inlined_call_operand.vmem [shape: f32[18,1], index: 1, kind: input, shape index: {}]
  %s2 = inlined_call_operand.vmem [shape: bf16[36,512], index: 2, kind: input, shape index: {}]
  %s3 = inlined_call_operand.vmem [shape: f32[18,512], index: 3, kind: output, shape index: {}]
  %s4 = sld [smem:[#allocation0]]
  $region22: #{deformable_conv_forward.2} parent=0
    _
  %s6 = ssub.s32 1, %s4
  %s7 = scalar_select 0, %s6, %s4
  // Predicated region
  $region2: #{deformable_conv_forward.2} parent=0 // pred_check
    _
  $region3: #{deformable_conv_forward.2} parent=0 // pred_check_branch
    %9 = sbr.rel (0) target = $region5
  $region4: #{deformable_conv_forward.2} parent=0 // pred_region
    _
  $region5: #{deformable_conv_forward.2} parent=0 // pred_fallthru
    _
  // Predicated region
  $region6: #{deformable_conv_forward.2} parent=0 // pred_check
    _
  $region7: #{deformable_conv_forward.2} parent=0 // pred_check_branch
    %11 = sbr.rel (0) target = $region9
  $region8: #{deformable_conv_forward.2} parent=0 // pred_region
    _
  $region9: #{deformable_conv_forward.2} parent=0 // pred_fallthru
    _
  // Predicated region
  $region10: #{deformable_conv_forward.2} parent=0 // pred_check
    _
  $region11: #{deformable_conv_forward.2} parent=0 // pred_check_branch
    %13 = sbr.rel (0) target = $region13
  $region12: #{deformable_conv_forward.2} parent=0 // pred_region
    _
  $region13: #{deformable_conv_forward.2} parent=0 // pred_fallthru
    _
  %v15 = vld [vmem:[%s0] sm:$0xf]
  %v16 = vld [vmem:[%s0 + $0x4] sm:$0xf]
  %v17 = vld [vmem:[%s0 + $0x8] sm:$0x1]
  %v18 = vld [vmem:[%s2] sm:$0xff]
  %v19 = vld [vmem:[%s2 + $0x8] sm:$0xff]
  %v20 = vld [vmem:[%s2 + $0x10] sm:$0xff]
  %v21 = vld [vmem:[%s2 + $0x18] sm:$0xff]
  %v22 = vld [vmem:[%s2 + $0x20] sm:$0xff]
  %v23 = vld [vmem:[%s2 + $0x28] sm:$0xff]
  %v24 = vld [vmem:[%s2 + $0x30] sm:$0xff]
  %v25 = vld [vmem:[%s2 + $0x38] sm:$0xff]
  %v26 = vld [vmem:[%s2 + $0x40] sm:$0x33]
  %v27 = vld [vmem:[%s2 + $0x48] sm:$0x33]
  %v28 = vld [vmem:[%s1] sm:$0xff]
  %v29 = vld [vmem:[%s1 + $0x8] sm:$0xff]
  %v30 = vld [vmem:[%s1 + $0x10] sm:$0x3]
  %32 = vset.pattern.permute.xlu0 0
  %33 = vperm.xlu0 %32, %v28
  %v34 = vpop.permute.xlu0 %33
  %37 = vset.pattern.permute.xlu0 0
  %38 = vperm.xlu0 %37, %v29
  %v39 = vpop.permute.xlu0 %38
  %42 = vset.pattern.permute.xlu0 0
  %43 = vperm.xlu0 %42, %v30
  %v44 = vpop.permute.xlu0 %43
  %v49 = vunpack.c.l.b16 %v15
  %v50 = vunpack.c.l.b16 %v16
  %v51 = vunpack.c.l.b16 %v17
  %v52 = vpack.c.b16 %v50, %v49
  %v53 = vpack.c.b16 %v51, %v51
  %v64 = vunpack.c.l.b16 %v18
  %v65 = vunpack.c.h.b16 %v18
  %v66 = vunpack.c.l.b16 %v19
  %v67 = vunpack.c.h.b16 %v19
  %v68 = vunpack.c.l.b16 %v20
  %v69 = vunpack.c.h.b16 %v20
  %v70 = vunpack.c.l.b16 %v21
  %v71 = vunpack.c.h.b16 %v21
  %v72 = vunpack.c.l.b16 %v22
  %v73 = vunpack.c.h.b16 %v22
  %v74 = vunpack.c.l.b16 %v23
  %v75 = vunpack.c.h.b16 %v23
  %v76 = vunpack.c.l.b16 %v24
  %v77 = vunpack.c.h.b16 %v24
  %v78 = vunpack.c.l.b16 %v25
  %v79 = vunpack.c.h.b16 %v25
  %v80 = vunpack.c.l.b16 %v26
  %v81 = vunpack.c.h.b16 %v26
  %v82 = vunpack.c.l.b16 %v27
  %v83 = vunpack.c.h.b16 %v27
  %v84 = vpack.c.b16 %v68, %v64
  %v85 = vpack.c.b16 %v69, %v65
  %v86 = vpack.c.b16 %v70, %v66
  %v87 = vpack.c.b16 %v71, %v67
  %v88 = vpack.c.b16 %v76, %v72
  %v89 = vpack.c.b16 %v77, %v73
  %v90 = vpack.c.b16 %v78, %v74
  %v91 = vpack.c.b16 %v79, %v75
  %v92 = vpack.c.b16 %v80, %v80
  %v93 = vpack.c.b16 %v81, %v81
  %v94 = vpack.c.b16 %v82, %v82
  %v95 = vpack.c.b16 %v83, %v83
  %vm104 = vcmask 293888
  %v106 = vsel %vm104, %v52, 0
  %v109 = vsel %vm104, %v53, 0
  %vm111 = vcmask 1041408
  %v113 = vsel %vm111, %v92, 0
  %v116 = vsel %vm111, %v93, 0
  %v119 = vsel %vm111, %v94, 0
  %v122 = vsel %vm111, %v95, 0
  %124 = vmatprep.subr.bf16.mxu0 0
  %125 = vmatpush1.bf16.msra.mxu0 0
  %126 = vmatprep.subr.bf16.mxu0 0
  %127 = vmatpush1.bf16.msra.mxu0 0
  %128 = vmatprep.subr.bf16.mxu0 0
  %129 = vmatpush1.bf16.msra.mxu0 0
  %130 = vmatprep.subr.bf16.mxu0 0
  %131 = vmatpush1.bf16.msra.mxu0 0
  %132 = vmatprep.subr.bf16.mxu0 0
  %133 = vmatpush1.bf16.msra.mxu0 0
  %134 = vmatprep.subr.bf16.mxu0 %v116
  %135 = vmatpush1.bf16.msra.mxu0 %v113
  %136 = vmatprep.subr.bf16.mxu0 %v89
  %137 = vmatpush1.bf16.msra.mxu0 %v88
  %138 = vmatprep.subr.bf16.mxu0 %v85
  %139 = vmatpush1.bf16.msra.mxu0 %v84
  %140 = vmatprep.subr.bf16.mxu0 0
  %141 = vmatpush2.bf16.msra.mxu0 0
  %142 = vmatprep.subr.bf16.mxu0 0
  %143 = vmatpush2.bf16.msra.mxu0 0
  %144 = vmatprep.subr.bf16.mxu0 0
  %145 = vmatpush2.bf16.msra.mxu0 0
  %146 = vmatprep.subr.bf16.mxu0 0
  %147 = vmatpush2.bf16.msra.mxu0 0
  %148 = vmatprep.subr.bf16.mxu0 0
  %149 = vmatpush2.bf16.msra.mxu0 0
  %150 = vmatprep.subr.bf16.mxu0 0
  %151 = vmatpush2.bf16.msra.mxu0 0
  %152 = vmatprep.subr.bf16.mxu0 0
  %153 = vmatpush2.bf16.msra.mxu0 0
  %154 = vmatprep.subr.bf16.mxu0 0
  %155 = vmatpush2.bf16.msra.mxu0 0
  %156 = vmatprep.mubr.bf16.mxu0 0
  %157 = vmatmul.mubr.bf16.gmra.mxu0 %v106
  %v158 = vpop.f32.mrf.mxu0
  %v159 = vadd.f32 %v34, %v158
  %v160 = vpop.f32.mrf.mxu0
  %v161 = vadd.f32 %v34, %v160
  %v162 = vpop.f32.mrf.mxu0
  %v163 = vadd.f32 %v39, %v162
  %v164 = vpop.f32.mrf.mxu0
  %v165 = vadd.f32 %v39, %v164
  %166 = vmatprep.mubr.bf16.mxu0 0
  %167 = vmatmul.mubr.bf16.gmra.mxu0 %v109
  %v168 = vpop.f32.mrf.mxu0
  %v169 = vadd.f32 %v44, %v168
  %v170 = vpop.f32.mrf.mxu0
  %v171 = vadd.f32 %v44, %v170
  %v172 = vpop.f32.mrf.mxu0
  %v173 = vpop.f32.mrf.mxu0
  %174 = vdwg.mxu0
  %175 = vmatprep.subr.bf16.mxu0 0
  %176 = vmatpush1.bf16.msra.mxu0 0
  %177 = vmatprep.subr.bf16.mxu0 0
  %178 = vmatpush1.bf16.msra.mxu0 0
  %179 = vmatprep.subr.bf16.mxu0 0
  %180 = vmatpush1.bf16.msra.mxu0 0
  %181 = vmatprep.subr.bf16.mxu0 0
  %182 = vmatpush1.bf16.msra.mxu0 0
  %183 = vmatprep.subr.bf16.mxu0 0
  %184 = vmatpush1.bf16.msra.mxu0 0
  %185 = vmatprep.subr.bf16.mxu0 %v122
  %186 = vmatpush1.bf16.msra.mxu0 %v119
  %187 = vmatprep.subr.bf16.mxu0 %v91
  %188 = vmatpush1.bf16.msra.mxu0 %v90
  %189 = vmatprep.subr.bf16.mxu0 %v87
  %190 = vmatpush1.bf16.msra.mxu0 %v86
  %191 = vmatprep.subr.bf16.mxu0 0
  %192 = vmatpush2.bf16.msra.mxu0 0
  %193 = vmatprep.subr.bf16.mxu0 0
  %194 = vmatpush2.bf16.msra.mxu0 0
  %195 = vmatprep.subr.bf16.mxu0 0
  %196 = vmatpush2.bf16.msra.mxu0 0
  %197 = vmatprep.subr.bf16.mxu0 0
  %198 = vmatpush2.bf16.msra.mxu0 0
  %199 = vmatprep.subr.bf16.mxu0 0
  %200 = vmatpush2.bf16.msra.mxu0 0
  %201 = vmatprep.subr.bf16.mxu0 0
  %202 = vmatpush2.bf16.msra.mxu0 0
  %203 = vmatprep.subr.bf16.mxu0 0
  %204 = vmatpush2.bf16.msra.mxu0 0
  %205 = vmatprep.subr.bf16.mxu0 0
  %206 = vmatpush2.bf16.msra.mxu0 0
  %207 = vmatprep.mubr.bf16.mxu0 0
  %208 = vmatmul.mubr.bf16.gmra.mxu0 %v106
  %v209 = vpop.f32.mrf.mxu0
  %v210 = vadd.f32 %v34, %v209
  %v211 = vpop.f32.mrf.mxu0
  %v212 = vadd.f32 %v34, %v211
  %v213 = vpop.f32.mrf.mxu0
  %v214 = vadd.f32 %v39, %v213
  %v215 = vpop.f32.mrf.mxu0
  %v216 = vadd.f32 %v39, %v215
  %217 = vmatprep.mubr.bf16.mxu0 0
  %218 = vmatmul.mubr.bf16.gmra.mxu0 %v109
  %v219 = vpop.f32.mrf.mxu0
  %v220 = vadd.f32 %v44, %v219
  %v221 = vpop.f32.mrf.mxu0
  %v222 = vadd.f32 %v44, %v221
  %v223 = vpop.f32.mrf.mxu0
  %v224 = vpop.f32.mrf.mxu0
  %225 = vdwg.mxu0
  %226 = vst [vmem:[%s3] sm:$0xff] %v159
  %227 = vst [vmem:[%s3 + $0x8] sm:$0xff] %v161
  %228 = vst [vmem:[%s3 + $0x10] sm:$0xff] %v210
  %229 = vst [vmem:[%s3 + $0x18] sm:$0xff] %v212
  %230 = vst [vmem:[%s3 + $0x20] sm:$0xff] %v163
  %231 = vst [vmem:[%s3 + $0x28] sm:$0xff] %v165
  %232 = vst [vmem:[%s3 + $0x30] sm:$0xff] %v214
  %233 = vst [vmem:[%s3 + $0x38] sm:$0xff] %v216
  %234 = vst [vmem:[%s3 + $0x40] sm:$0x3] %v169
  %235 = vst [vmem:[%s3 + $0x48] sm:$0x3] %v171
  %236 = vst [vmem:[%s3 + $0x50] sm:$0x3] %v220
  %237 = vst [vmem:[%s3 + $0x58] sm:$0x3] %v222
  // Predicated region
  $region14: #{deformable_conv_forward.2} parent=0 // pred_check
    _
  $region15: #{deformable_conv_forward.2} parent=0 // pred_check_branch
    %239 = sbr.rel (0) target = $region17
  $region16: #{deformable_conv_forward.2} parent=0 // pred_region
    _
  $region17: #{deformable_conv_forward.2} parent=0 // pred_fallthru
    _
  // Predicated region
  $region18: #{deformable_conv_forward.2} parent=0 // pred_check
    _
  $region19: #{deformable_conv_forward.2} parent=0 // pred_check_branch
    %241 = sbr.rel (0) target = $region21
  $region20: #{deformable_conv_forward.2} parent=0 // pred_region
    _
  $region21: #{deformable_conv_forward.2} parent=0 // pred_fallthru
    _

// kernel: deformable_conv_forward.3
$region0: #{deformable_conv_forward.3}
  #allocation0 [shape = 'u32[]', space=smem, size = 0x4, offset = 0x4, fixed_abs, tag = 'smem constant byte address 0x4 - core index']
  #allocation1 [shape = 'u32[144,128]{1,0:T(1,128)}', space=vmem, size = 0x12000, scoped, tag = 'internal scratch']
  %s0 = inlined_call_operand.vmem [shape: bf16[8,36], index: 0, kind: input, shape index: {}]
  %s1 = inlined_call_operand.vmem [shape: bf16[36,512], index: 1, kind: input, shape index: {}]
  %s2 = inlined_call_operand.vmem [shape: f32[8,512], index: 2, kind: output, shape index: {0}]
  %s3 = inlined_call_operand.vmem [shape: f32[8,128], index: 3, kind: output, shape index: {1}]
  %s4 = inlined_call_operand.vmem [shape: f32[8,128], index: 4, kind: output, shape index: {2}]
  %5 = xla_tuple %s2, %s3, %s4
  %s6 = sld [smem:[#allocation0]]
  $region34: #{deformable_conv_forward.3} parent=0
    _
  %s8 = ssub.s32 1, %s6
  %s9 = scalar_select 0, %s8, %s6
  // Predicated region
  $region2: #{deformable_conv_forward.3} parent=0 // pred_check
    _
  $region3: #{deformable_conv_forward.3} parent=0 // pred_check_branch
    %11 = sbr.rel (0) target = $region5
  $region4: #{deformable_conv_forward.3} parent=0 // pred_region
    _
  $region5: #{deformable_conv_forward.3} parent=0 // pred_fallthru
    _
  // Predicated region
  $region6: #{deformable_conv_forward.3} parent=0 // pred_check
    _
  $region7: #{deformable_conv_forward.3} parent=0 // pred_check_branch
    %13 = sbr.rel (0) target = $region9
  $region8: #{deformable_conv_forward.3} parent=0 // pred_region
    _
  $region9: #{deformable_conv_forward.3} parent=0 // pred_fallthru
    _
  %v15 = vld [vmem:[%s0] sm:$0xf]
  %v16 = vld [vmem:[%s1] sm:$0xff]
  %v17 = vld [vmem:[%s1 + $0x8] sm:$0xff]
  %v18 = vld [vmem:[%s1 + $0x10] sm:$0xff]
  %v19 = vld [vmem:[%s1 + $0x18] sm:$0xff]
  %v20 = vld [vmem:[%s1 + $0x20] sm:$0xff]
  %v21 = vld [vmem:[%s1 + $0x28] sm:$0xff]
  %v22 = vld [vmem:[%s1 + $0x30] sm:$0xff]
  %v23 = vld [vmem:[%s1 + $0x38] sm:$0xff]
  %v24 = vld [vmem:[%s1 + $0x40] sm:$0x33]
  %v25 = vld [vmem:[%s1 + $0x48] sm:$0x33]
  %v36 = vunpack.c.l.b16 %v16
  %v37 = vunpack.c.h.b16 %v16
  %v38 = vunpack.c.l.b16 %v17
  %v39 = vunpack.c.h.b16 %v17
  %v40 = vunpack.c.l.b16 %v18
  %v41 = vunpack.c.h.b16 %v18
  %v42 = vunpack.c.l.b16 %v19
  %v43 = vunpack.c.h.b16 %v19
  %v44 = vunpack.c.l.b16 %v20
  %v45 = vunpack.c.h.b16 %v20
  %v46 = vunpack.c.l.b16 %v21
  %v47 = vunpack.c.h.b16 %v21
  %v48 = vunpack.c.l.b16 %v22
  %v49 = vunpack.c.h.b16 %v22
  %v50 = vunpack.c.l.b16 %v23
  %v51 = vunpack.c.h.b16 %v23
  %v52 = vunpack.c.l.b16 %v24
  %v53 = vunpack.c.h.b16 %v24
  %v54 = vunpack.c.l.b16 %v25
  %v55 = vunpack.c.h.b16 %v25
  %v56 = vpack.c.b16 %v40, %v36
  %v57 = vpack.c.b16 %v41, %v37
  %v58 = vpack.c.b16 %v42, %v38
  %v59 = vpack.c.b16 %v43, %v39
  %v60 = vpack.c.b16 %v48, %v44
  %v61 = vpack.c.b16 %v49, %v45
  %v62 = vpack.c.b16 %v50, %v46
  %v63 = vpack.c.b16 %v51, %v47
  %v64 = vpack.c.b16 %v52, %v52
  %v65 = vpack.c.b16 %v53, %v53
  %v66 = vpack.c.b16 %v54, %v54
  %v67 = vpack.c.b16 %v55, %v55
  %vm76 = vcmask 293888
  %v78 = vsel %vm76, %v15, 0
  %vm80 = vcmask 1041408
  %v82 = vsel %vm80, %v64, 0
  %v85 = vsel %vm80, %v65, 0
  %v88 = vsel %vm80, %v66, 0
  %v91 = vsel %vm80, %v67, 0
  %93 = vmatprep.subr.bf16.mxu0 0
  %94 = vmatpush1.bf16.msra.mxu0 0
  %95 = vmatprep.subr.bf16.mxu0 0
  %96 = vmatpush1.bf16.msra.mxu0 0
  %97 = vmatprep.subr.bf16.mxu0 0
  %98 = vmatpush1.bf16.msra.mxu0 0
  %99 = vmatprep.subr.bf16.mxu0 0
  %100 = vmatpush1.bf16.msra.mxu0 0
  %101 = vmatprep.subr.bf16.mxu0 0
  %102 = vmatpush1.bf16.msra.mxu0 0
  %103 = vmatprep.subr.bf16.mxu0 %v85
  %104 = vmatpush1.bf16.msra.mxu0 %v82
  %105 = vmatprep.subr.bf16.mxu0 %v61
  %106 = vmatpush1.bf16.msra.mxu0 %v60
  %107 = vmatprep.subr.bf16.mxu0 %v57
  %108 = vmatpush1.bf16.msra.mxu0 %v56
  %109 = vmatprep.subr.bf16.mxu0 0
  %110 = vmatpush2.bf16.msra.mxu0 0
  %111 = vmatprep.subr.bf16.mxu0 0
  %112 = vmatpush2.bf16.msra.mxu0 0
  %113 = vmatprep.subr.bf16.mxu0 0
  %114 = vmatpush2.bf16.msra.mxu0 0
  %115 = vmatprep.subr.bf16.mxu0 0
  %116 = vmatpush2.bf16.msra.mxu0 0
  %117 = vmatprep.subr.bf16.mxu0 0
  %118 = vmatpush2.bf16.msra.mxu0 0
  %119 = vmatprep.subr.bf16.mxu0 0
  %120 = vmatpush2.bf16.msra.mxu0 0
  %121 = vmatprep.subr.bf16.mxu0 0
  %122 = vmatpush2.bf16.msra.mxu0 0
  %123 = vmatprep.subr.bf16.mxu0 0
  %124 = vmatpush2.bf16.msra.mxu0 0
  %125 = vmatprep.mubr.bf16.mxu0 0
  %126 = vmatmul.mubr.bf16.gmra.mxu0 %v78
  %v127 = vpop.f32.mrf.mxu0
  %v128 = vadd.f32 0.0, %v127
  %v129 = vpop.f32.mrf.mxu0
  %v130 = vadd.f32 0.0, %v129
  %v131 = vpop.f32.mrf.mxu0
  %v132 = vpop.f32.mrf.mxu0
  %133 = vdwg.mxu0
  %134 = vmatprep.subr.bf16.mxu0 0
  %135 = vmatpush1.bf16.msra.mxu0 0
  %136 = vmatprep.subr.bf16.mxu0 0
  %137 = vmatpush1.bf16.msra.mxu0 0
  %138 = vmatprep.subr.bf16.mxu0 0
  %139 = vmatpush1.bf16.msra.mxu0 0
  %140 = vmatprep.subr.bf16.mxu0 0
  %141 = vmatpush1.bf16.msra.mxu0 0
  %142 = vmatprep.subr.bf16.mxu0 0
  %143 = vmatpush1.bf16.msra.mxu0 0
  %144 = vmatprep.subr.bf16.mxu0 %v91
  %145 = vmatpush1.bf16.msra.mxu0 %v88
  %146 = vmatprep.subr.bf16.mxu0 %v63
  %147 = vmatpush1.bf16.msra.mxu0 %v62
  %148 = vmatprep.subr.bf16.mxu0 %v59
  %149 = vmatpush1.bf16.msra.mxu0 %v58
  %150 = vmatprep.subr.bf16.mxu0 0
  %151 = vmatpush2.bf16.msra.mxu0 0
  %152 = vmatprep.subr.bf16.mxu0 0
  %153 = vmatpush2.bf16.msra.mxu0 0
  %154 = vmatprep.subr.bf16.mxu0 0
  %155 = vmatpush2.bf16.msra.mxu0 0
  %156 = vmatprep.subr.bf16.mxu0 0
  %157 = vmatpush2.bf16.msra.mxu0 0
  %158 = vmatprep.subr.bf16.mxu0 0
  %159 = vmatpush2.bf16.msra.mxu0 0
  %160 = vmatprep.subr.bf16.mxu0 0
  %161 = vmatpush2.bf16.msra.mxu0 0
  %162 = vmatprep.subr.bf16.mxu0 0
  %163 = vmatpush2.bf16.msra.mxu0 0
  %164 = vmatprep.subr.bf16.mxu0 0
  %165 = vmatpush2.bf16.msra.mxu0 0
  %166 = vmatprep.mubr.bf16.mxu0 0
  %167 = vmatmul.mubr.bf16.gmra.mxu0 %v78
  %v168 = vpop.f32.mrf.mxu0
  %v169 = vadd.f32 0.0, %v168
  %v170 = vpop.f32.mrf.mxu0
  %v171 = vadd.f32 0.0, %v170
  %v172 = vpop.f32.mrf.mxu0
  %v173 = vpop.f32.mrf.mxu0
  %174 = vdwg.mxu0
  %175 = vst [vmem:[%s2] sm:$0xff] %v128
  %176 = vst [vmem:[%s2 + $0x8] sm:$0xff] %v130
  %177 = vst [vmem:[%s2 + $0x10] sm:$0xff] %v169
  %178 = vst [vmem:[%s2 + $0x18] sm:$0xff] %v171
  %v179 = vadd.f32 %v128, %v130
  %v180 = vadd.f32 %v179, %v169
  %v181 = vadd.f32 %v180, %v171
  %182 = vadd.xlane.f32.xlu0 %v181
  %v183 = vpop.xlane.xlu0 %182
  %v184 = vmul.f32 %v128, %v128
  %v185 = vmul.f32 %v130, %v130
  %v186 = vmul.f32 %v169, %v169
  %v187 = vmul.f32 %v171, %v171
  %v188 = vadd.f32 %v184, %v185
  %v189 = vadd.f32 %v188, %v186
  %v190 = vadd.f32 %v189, %v187
  %191 = vadd.xlane.f32.xlu0 %v190
  %v192 = vpop.xlane.xlu0 %191
  %193 = vst [vmem:[%s3] sm:$0xff] %v183
  %194 = vst [vmem:[%s4] sm:$0xff] %v192
  // Predicated region
  $region10: #{deformable_conv_forward.3} parent=0 // pred_check
    _
  $region11: #{deformable_conv_forward.3} parent=0 // pred_check_branch
    %196 = sbr.rel (0) target = $region13
  $region12: #{deformable_conv_forward.3} parent=0 // pred_region
    _
  $region13: #{deformable_conv_forward.3} parent=0 // pred_fallthru
    _
  // Predicated region
  $region14: #{deformable_conv_forward.3} parent=0 // pred_check
    _
  $region15: #{deformable_conv_forward.3} parent=0 // pred_check_branch
    %198 = sbr.rel (0) target = $region17
  $region16: #{deformable_conv_forward.3} parent=0 // pred_region
    _
  $region17: #{deformable_conv_forward.3} parent=0 // pred_fallthru
    _
  // Predicated region
  $region18: #{deformable_conv_forward.3} parent=0 // pred_check
    _
  $region19: #{deformable_conv_forward.3} parent=0 // pred_check_branch
    %200 = sbr.rel (0) target = $region21
  $region20: #{deformable_conv_forward.3} parent=0 // pred_region
    _
  $region21: #{deformable_conv_forward.3} parent=0 // pred_fallthru
    _
  // Predicated region
  $region22: #{deformable_conv_forward.3} parent=0 // pred_check
    _
  $region23: #{deformable_conv_forward.3} parent=0 // pred_check_branch
    %202 = sbr.rel (0) target = $region25
  $region24: #{deformable_conv_forward.3} parent=0 // pred_region
    _
  $region25: #{deformable_conv_forward.3} parent=0 // pred_fallthru
    _
  // Predicated region
  $region26: #{deformable_conv_forward.3} parent=0 // pred_check
    _
  $region27: #{deformable_conv_forward.3} parent=0 // pred_check_branch
    %204 = sbr.rel (0) target = $region29
  $region28: #{deformable_conv_forward.3} parent=0 // pred_region
    _
  $region29: #{deformable_conv_forward.3} parent=0 // pred_fallthru
    _
  // Predicated region
  $region30: #{deformable_conv_forward.3} parent=0 // pred_check
    _
  $region31: #{deformable_conv_forward.3} parent=0 // pred_check_branch
    %206 = sbr.rel (0) target = $region33
  $region32: #{deformable_conv_forward.3} parent=0 // pred_region
    _
  $region33: #{deformable_conv_forward.3} parent=0 // pred_fallthru
    _

</llo_original>
